<compile_context>
chip_gen: v6e
topology: v6e:2x2x1
jax: 0.10.0
libtpu: 0.0.40
codegen_flags: <defaults>
</compile_context>

<pallas_src>
import numpy as np
import jax
import jax.numpy as jnp
from jax.experimental import pallas as pl
from jax.experimental.pallas import tpu as pltpu

EPS = 1e-6  # RMSNorm eps


def _model_kernel(ids_ref, g_ref, emb_ref, w1_ref, b1_ref, w2_ref, b2_ref, out_ref):
    rb = ids_ref.shape[0]          # rows (= batch_block * T) in this grid step
    V, D = emb_ref.shape
    T = g_ref.shape[0]

    # Embedding lookup: build the one-hot in-kernel (no HBM round-trip) and run
    # it through the MXU in bf16 with f32 accumulation.  With exactly one
    # nonzero per row the result is the (bf16-rounded) embedding row.
    ids = ids_ref[...]                                               # (rb, 1) int32
    vocab_iota = jax.lax.broadcasted_iota(jnp.int32, (rb, V), 1)     # (rb, V)
    onehot = (ids == vocab_iota).astype(jnp.bfloat16)
    x = jnp.dot(onehot, emb_ref[...], preferred_element_type=jnp.float32)  # (rb, D) f32

    # RMSNorm over d_model (f32 statistics), scaled by the learned (T, D)
    # weight.  Rows are batch-major / position-minor and rb is a multiple of T,
    # so the scale broadcasts over the per-block batch sub-axis.
    var = jnp.mean(x * x, axis=-1, keepdims=True)                    # (rb, 1)
    xn = x * jax.lax.rsqrt(var + EPS)                                # (rb, D)
    h = (xn.reshape(rb // T, T, D) * g_ref[...][None]).reshape(rb, D)

    # Linear(D, D) + ReLU + Linear(D, V): bf16 operands, f32 accumulation.
    h1 = jnp.dot(h.astype(jnp.bfloat16), w1_ref[...],
                 preferred_element_type=jnp.float32) + b1_ref[...]   # (rb, D)
    h1 = jnp.maximum(h1, 0.0)
    out_ref[...] = (jnp.dot(h1.astype(jnp.bfloat16), w2_ref[...],
                            preferred_element_type=jnp.float32)
                    + b2_ref[...]).astype(out_ref.dtype)             # (rb, V)


def simple_broken_model_forward(idx, emb, g, w1, b1, w2, b2, *, batch_block=None):
    """Forward pass of SimpleBrokenModel (targets=None path).

    idx: (B, T) int token ids      emb: (V, D) embedding table
    g:   (T, D) RMSNorm scale      w1/b1, w2/b2: Linear params, weights (in, out)
    """
    B, T = idx.shape
    V, D = emb.shape
    rows = B * T
    assert g.shape == (T, D)

    # Rows per grid step = batch_block * T: padding-free blocks and a natively
    # shaped (T, D) RMSNorm scale.  Default: two balanced blocks (v7x dual-TC),
    # capped at ~512 rows/block; single block for tiny / odd batches.
    if batch_block is None:
        bb = B
        if B % 2 == 0 and T % 8 == 0:
            bb = B // 2
            while bb % 2 == 0 and bb * T > 512:
                bb //= 2
    else:
        bb = batch_block
    assert B % bb == 0, "batch_block must divide batch"
    rb = bb * T
    assert rb == rows or rb % 8 == 0, "block rows must be sublane-aligned"
    n_blocks = B // bb

    ids = idx.reshape(rows, 1).astype(jnp.int32)

    # bf16 matmul operands; RMSNorm scale and biases stay f32.
    emb_bf = emb.astype(jnp.bfloat16)
    w1_bf = w1.astype(jnp.bfloat16)
    w2_bf = w2.astype(jnp.bfloat16)
    g_f = g.astype(jnp.float32)
    b1_f = b1.reshape(1, D).astype(jnp.float32)
    b2_f = b2.reshape(1, V).astype(jnp.float32)

    # Constant-index operands: single-buffered (their block index never changes,
    # so a second buffer is pure VMEM waste).
    resident = dict(pipeline_mode=pl.Buffered(1))

    grid_spec = pltpu.PrefetchScalarGridSpec(
        num_scalar_prefetch=0,
        grid=(n_blocks,),
        in_specs=[
            pl.BlockSpec((rb, 1), lambda r: (r, 0)),                 # token ids
            pl.BlockSpec((T, D), lambda r: (0, 0), **resident),      # RMSNorm scale
            pl.BlockSpec((V, D), lambda r: (0, 0), **resident),      # embedding (bf16)
            pl.BlockSpec((D, D), lambda r: (0, 0), **resident),      # W1 (in, out) bf16
            pl.BlockSpec((1, D), lambda r: (0, 0), **resident),      # b1
            pl.BlockSpec((D, V), lambda r: (0, 0), **resident),      # W2 (in, out) bf16
            pl.BlockSpec((1, V), lambda r: (0, 0), **resident),      # b2
        ],
        out_specs=pl.BlockSpec((rb, V), lambda r: (r, 0)),
    )

    # VMEM footprint: double-buffered row streams + single-buffered residents.
    vmem_bytes = (2 * rb * 4                      # ids
                  + T * D * 4                     # g
                  + (V * D + D * D + D * V) * 2   # bf16 weights
                  + (D + V) * 4                   # biases
                  + 2 * rb * V * 4)               # logits
    vmem_limit = int(min(96 << 20, max(16 << 20, 4 * vmem_bytes)))

    cost = pl.CostEstimate(
        flops=2 * rows * (V * D + D * D + D * V),
        transcendentals=rows,  # one rsqrt per row
        bytes_accessed=(4 * rows + 4 * T * D + 2 * (V * D + D * D + D * V)
                        + 4 * (D + V) + 4 * rows * V),
    )

    out = pl.pallas_call(
        _model_kernel,
        out_shape=jax.ShapeDtypeStruct((rows, V), jnp.float32),
        grid_spec=grid_spec,
        compiler_params=pltpu.CompilerParams(
            dimension_semantics=("parallel",),
            vmem_limit_bytes=vmem_limit,
        ),
        cost_estimate=cost,
    )(ids, g_f, emb_bf, w1_bf, b1_f, w2_bf, b2_f)

    return out.reshape(B, T, V)


def reference_forward(idx, emb, g, w1, b1, w2, b2):
    # Pure-JAX f32 reference mirroring the PyTorch forward.
    x = emb[idx]                                           # (B, T, D)
    var = jnp.mean(x * x, axis=-1, keepdims=True)          # mean over D only
    h = g * (x * jax.lax.rsqrt(var + EPS))                 # (T, D) scale, bcast over B
    h1 = jnp.maximum(h @ w1 + b1, 0.0)
    return h1 @ w2 + b2


if __name__ == "__main__":
    # Small config consistent with the module: batch=4, context_window=48,
    # d_model=128 (lane-dense), vocab_size=256 (lane-dense logits).
    B, T, D, V = 4, 48, 128, 256

    key = jax.random.PRNGKey(0)
    k_idx, k_emb, k_g, k_w1, k_b1, k_w2, k_b2 = jax.random.split(key, 7)

    idx = jax.random.randint(k_idx, (B, T), 0, V, dtype=jnp.int32)
    emb = jax.random.normal(k_emb, (V, D), dtype=jnp.float32)            # nn.Embedding ~ N(0,1)
    g = 1.0 + 0.1 * jax.random.normal(k_g, (T, D), dtype=jnp.float32)    # RMSNorm weight
    w1 = jax.random.normal(k_w1, (D, D), dtype=jnp.float32) * (D ** -0.5)
    b1 = jax.random.normal(k_b1, (1, D), dtype=jnp.float32) * 0.01
    w2 = jax.random.normal(k_w2, (D, V), dtype=jnp.float32) * (D ** -0.5)
    b2 = jax.random.normal(k_b2, (1, V), dtype=jnp.float32) * 0.01

    # Default block selection: 2 blocks x 96 rows, zero padding.
    logits = simple_broken_model_forward(idx, emb, g, w1, b1, w2, b2)
    jax.block_until_ready(logits)

    ref = reference_forward(idx, emb, g, w1, b1, w2, b2)
    assert logits.shape == (B, T, V)
    # Tolerance loosened for bf16 matmul operands (f32 accumulation / stats).
    np.testing.assert_allclose(np.asarray(logits), np.asarray(ref), rtol=2e-2, atol=5e-2)
    print("KERNEL_OK")
</pallas_src>

<mosaic_0001>
module attributes {stable_mosaic.version = 11 : i64} {
  func.func @_model_kernel(%arg0: i32, %arg1: memref<96x1xi32, #tpu.memory_space<vmem>>, %arg2: memref<48x128xf32, #tpu.memory_space<vmem>>, %arg3: memref<256x128xbf16, #tpu.memory_space<vmem>>, %arg4: memref<128x128xbf16, #tpu.memory_space<vmem>>, %arg5: memref<1x128xf32, #tpu.memory_space<vmem>>, %arg6: memref<128x256xbf16, #tpu.memory_space<vmem>>, %arg7: memref<1x256xf32, #tpu.memory_space<vmem>>, %arg8: memref<96x256xf32, #tpu.memory_space<vmem>>) attributes {dimension_semantics = [#tpu.dimension_semantics<parallel>], iteration_bounds = array<i64: 2>, scalar_prefetch = 0 : i64, scratch_operands = 0 : i64, tpu.core_type = #tpu.core_type<tc>, window_params = [{transform_indices = @transform_0, window_bounds = array<i64: 96, 1>}, {pipeline_mode = #tpu.pipeline_mode<synchronous>, transform_indices = @transform_1, window_bounds = array<i64: 48, 128>}, {pipeline_mode = #tpu.pipeline_mode<synchronous>, transform_indices = @transform_2, window_bounds = array<i64: 256, 128>}, {pipeline_mode = #tpu.pipeline_mode<synchronous>, transform_indices = @transform_3, window_bounds = array<i64: 128, 128>}, {pipeline_mode = #tpu.pipeline_mode<synchronous>, transform_indices = @transform_4, window_bounds = array<i64: 1, 128>}, {pipeline_mode = #tpu.pipeline_mode<synchronous>, transform_indices = @transform_5, window_bounds = array<i64: 128, 256>}, {pipeline_mode = #tpu.pipeline_mode<synchronous>, transform_indices = @transform_6, window_bounds = array<i64: 1, 256>}, {transform_indices = @transform_7, window_bounds = array<i64: 96, 256>}]} {
    %c0 = arith.constant 0 : index
    %c0_0 = arith.constant 0 : index
    %0 = vector.load %arg1[%c0, %c0_0] : memref<96x1xi32, #tpu.memory_space<vmem>>, vector<96x1xi32>
    %1 = tpu.iota {dimensions = array<i32: 1>} : vector<96x256xi32>
    %2 = vector.broadcast %0 : vector<96x1xi32> to vector<96x256xi32>
    %3 = arith.cmpi eq, %2, %1 : vector<96x256xi32>
    %4 = arith.extui %3 : vector<96x256xi1> to vector<96x256xi32>
    %5 = arith.sitofp %4 : vector<96x256xi32> to vector<96x256xf32>
    %6 = arith.truncf %5 : vector<96x256xf32> to vector<96x256xbf16>
    %c0_1 = arith.constant 0 : index
    %c0_2 = arith.constant 0 : index
    %7 = vector.load %arg3[%c0_1, %c0_2] : memref<256x128xbf16, #tpu.memory_space<vmem>>, vector<256x128xbf16>
    %cst = arith.constant dense<0.000000e+00> : vector<96x128xf32>
    %8 = tpu.matmul %6, %7, %cst {dimension_numbers = #tpu.dot_dimension_numbers<[1], [0], [0], [1], [0, 0, 1, 1], [], []>} : vector<96x256xbf16>, vector<256x128xbf16>, vector<96x128xf32> -> vector<96x128xf32>
    %9 = arith.mulf %8, %8 : vector<96x128xf32>
    %cst_3 = arith.constant dense<0.000000e+00> : vector<96xf32>
    %10 = vector.multi_reduction <add>, %9, %cst_3 [1] : vector<96x128xf32> to vector<96xf32>
    %11 = vector.shape_cast %10 : vector<96xf32> to vector<96x1xf32>
    %cst_4 = arith.constant 1.280000e+02 : f32
    %12 = vector.broadcast %cst_4 : f32 to vector<96x1xf32>
    %13 = arith.divf %11, %12 : vector<96x1xf32>
    %cst_5 = arith.constant 9.99999997E-7 : f32
    %14 = vector.broadcast %cst_5 : f32 to vector<96x1xf32>
    %15 = arith.addf %13, %14 : vector<96x1xf32>
    %16 = math.rsqrt %15 : vector<96x1xf32>
    %17 = vector.broadcast %16 : vector<96x1xf32> to vector<96x128xf32>
    %18 = arith.mulf %8, %17 : vector<96x128xf32>
    %19 = vector.shape_cast %18 : vector<96x128xf32> to vector<2x48x128xf32>
    %c0_6 = arith.constant 0 : index
    %c0_7 = arith.constant 0 : index
    %20 = vector.load %arg2[%c0_6, %c0_7] : memref<48x128xf32, #tpu.memory_space<vmem>>, vector<48x128xf32>
    %21 = vector.shape_cast %20 : vector<48x128xf32> to vector<1x48x128xf32>
    %22 = vector.broadcast %21 : vector<1x48x128xf32> to vector<2x48x128xf32>
    %23 = arith.mulf %19, %22 : vector<2x48x128xf32>
    %24 = vector.shape_cast %23 : vector<2x48x128xf32> to vector<96x128xf32>
    %25 = arith.truncf %24 : vector<96x128xf32> to vector<96x128xbf16>
    %c0_8 = arith.constant 0 : index
    %c0_9 = arith.constant 0 : index
    %26 = vector.load %arg4[%c0_8, %c0_9] : memref<128x128xbf16, #tpu.memory_space<vmem>>, vector<128x128xbf16>
    %cst_10 = arith.constant dense<0.000000e+00> : vector<96x128xf32>
    %27 = tpu.matmul %25, %26, %cst_10 {dimension_numbers = #tpu.dot_dimension_numbers<[1], [0], [0], [1], [0, 0, 1, 1], [], []>} : vector<96x128xbf16>, vector<128x128xbf16>, vector<96x128xf32> -> vector<96x128xf32>
    %c0_11 = arith.constant 0 : index
    %c0_12 = arith.constant 0 : index
    %28 = vector.load %arg5[%c0_11, %c0_12] : memref<1x128xf32, #tpu.memory_space<vmem>>, vector<1x128xf32>
    %29 = vector.broadcast %28 : vector<1x128xf32> to vector<96x128xf32>
    %30 = arith.addf %27, %29 : vector<96x128xf32>
    %cst_13 = arith.constant 0.000000e+00 : f32
    %31 = vector.broadcast %cst_13 : f32 to vector<96x128xf32>
    %32 = arith.maximumf %30, %31 : vector<96x128xf32>
    %33 = arith.truncf %32 : vector<96x128xf32> to vector<96x128xbf16>
    %c0_14 = arith.constant 0 : index
    %c0_15 = arith.constant 0 : index
    %34 = vector.load %arg6[%c0_14, %c0_15] : memref<128x256xbf16, #tpu.memory_space<vmem>>, vector<128x256xbf16>
    %cst_16 = arith.constant dense<0.000000e+00> : vector<96x256xf32>
    %35 = tpu.matmul %33, %34, %cst_16 {dimension_numbers = #tpu.dot_dimension_numbers<[1], [0], [0], [1], [0, 0, 1, 1], [], []>} : vector<96x128xbf16>, vector<128x256xbf16>, vector<96x256xf32> -> vector<96x256xf32>
    %c0_17 = arith.constant 0 : index
    %c0_18 = arith.constant 0 : index
    %36 = vector.load %arg7[%c0_17, %c0_18] : memref<1x256xf32, #tpu.memory_space<vmem>>, vector<1x256xf32>
    %37 = vector.broadcast %36 : vector<1x256xf32> to vector<96x256xf32>
    %38 = arith.addf %35, %37 : vector<96x256xf32>
    %c0_19 = arith.constant 0 : index
    %c0_20 = arith.constant 0 : index
    %39 = vector.load %arg8[%c0_19, %c0_20] : memref<96x256xf32, #tpu.memory_space<vmem>>, vector<96x256xf32>
    tpu.vector_store %arg8[%c0_19, %c0_20], %38 {strides = array<i32>} : memref<96x256xf32, #tpu.memory_space<vmem>>, vector<96x256xf32>,
    return
  }
  func.func @transform_0(%arg0: i32) -> (i32, i32) {
    %c0_i32 = arith.constant 0 : i32
    %c0_i32_0 = arith.constant 0 : i32
    return %arg0, %c0_i32 : i32, i32
  }
  func.func @transform_1(%arg0: i32) -> (i32, i32) {
    %c0_i32 = arith.constant 0 : i32
    %c0_i32_0 = arith.constant 0 : i32
    %c0_i32_1 = arith.constant 0 : i32
    return %c0_i32, %c0_i32_0 : i32, i32
  }
  func.func @transform_2(%arg0: i32) -> (i32, i32) {
    %c0_i32 = arith.constant 0 : i32
    %c0_i32_0 = arith.constant 0 : i32
    %c0_i32_1 = arith.constant 0 : i32
    return %c0_i32, %c0_i32_0 : i32, i32
  }
  func.func @transform_3(%arg0: i32) -> (i32, i32) {
    %c0_i32 = arith.constant 0 : i32
    %c0_i32_0 = arith.constant 0 : i32
    %c0_i32_1 = arith.constant 0 : i32
    return %c0_i32, %c0_i32_0 : i32, i32
  }
  func.func @transform_4(%arg0: i32) -> (i32, i32) {
    %c0_i32 = arith.constant 0 : i32
    %c0_i32_0 = arith.constant 0 : i32
    %c0_i32_1 = arith.constant 0 : i32
    return %c0_i32, %c0_i32_0 : i32, i32
  }
  func.func @transform_5(%arg0: i32) -> (i32, i32) {
    %c0_i32 = arith.constant 0 : i32
    %c0_i32_0 = arith.constant 0 : i32
    %c0_i32_1 = arith.constant 0 : i32
    return %c0_i32, %c0_i32_0 : i32, i32
  }
  func.func @transform_6(%arg0: i32) -> (i32, i32) {
    %c0_i32 = arith.constant 0 : i32
    %c0_i32_0 = arith.constant 0 : i32
    %c0_i32_1 = arith.constant 0 : i32
    return %c0_i32, %c0_i32_0 : i32, i32
  }
  func.func @transform_7(%arg0: i32) -> (i32, i32) {
    %c0_i32 = arith.constant 0 : i32
    %c0_i32_0 = arith.constant 0 : i32
    return %arg0, %c0_i32 : i32, i32
  }
}

</mosaic_0001>

<llo_original>
// kernel: tpu_custom_call.1
$region0: #{tpu_custom_call.1}
  #allocation0 [shape = 'u32[]', space=smem, size = 0x4, offset = 0x4, fixed_abs, tag = 'smem constant byte address 0x4 - core index']
  #allocation1 [shape = 'u32[144,128]{1,0:T(1,128)}', space=vmem, size = 0x12000, scoped, tag = 'internal scratch']
  %s0 = inlined_call_operand.vmem [shape: s32[192,1], index: 0, kind: input, shape index: {}]
  %s1 = inlined_call_operand.hbm [shape: f32[48,128], index: 1, kind: input, shape index: {}]
  %s2 = inlined_call_operand.vmem [shape: bf16[256,128], index: 2, kind: input, shape index: {}]
  %s3 = inlined_call_operand.vmem [shape: bf16[128,128], index: 3, kind: input, shape index: {}]
  %s4 = inlined_call_operand.vmem [shape: f32[1,128], index: 4, kind: input, shape index: {}]
  %s5 = inlined_call_operand.hbm [shape: bf16[128,256], index: 5, kind: input, shape index: {}]
  %s6 = inlined_call_operand.vmem [shape: f32[1,256], index: 6, kind: input, shape index: {}]
  %s7 = inlined_call_operand.hbm [shape: f32[192,256], index: 7, kind: output, shape index: {}]
  %s8 = sld [smem:[#allocation0]]
  $region69: #{tpu_custom_call.1} parent=0
    _
  %s10 = ssub.s32 1, %s8
  %s11 = scalar_select 0, %s10, %s8
  $region1: #{tpu_custom_call.1} parent=0
    #allocation2 [shape = 'u8[24576]{0}', space=vmem, size = 0x6000, scoped, tag = 'input window, operand 1, single buffered']
    #allocation3 [shape = 's32[2]{0}', space=sflag, size = 0x8, scoped, tag = 'scoped memory for tpu_custom_call.1']
    #allocation4 [shape = 's32[2]{0}', space=sflag, size = 0x8, scoped, tag = 'scoped memory for tpu_custom_call.1']
    #allocation5 [shape = 'u8[65536]{0}', space=vmem, size = 0x10000, scoped, tag = 'input window, operand 5, single buffered']
    #allocation6 [shape = 's32[1]{0}', space=sflag, size = 0x4, scoped, tag = 'scoped memory for tpu_custom_call.1']
    #allocation7 [shape = 'u8[196608]{0}', space=vmem, size = 0x30000, scoped, tag = 'output window, operand 0']
    %12 = vsyncpa [#allocation3], 0
    %13 = vsyncpa [#allocation6], 0
    %14 = vsyncpa [#allocation4], 0
    %s15 = scalar_lea.sflag [#allocation4], 1
    %16 = vsyncpa %s15, 0
    loop: start=0, step=1, limit=4
    $region2: #{tpu_custom_call.1} parent=1 // loop_pre_header
      _
    $region3: #{tpu_custom_call.1} parent=1 // loop_header
      %s18 = sphi 0, %s22
      %p19 = scmp.ge.s32.totalorder %s18, 4
      %s28 = sphi 0, %s30
      %s31 = sphi 0, %s28
      %s32 = sphi 0, %s31
      %s48 = sphi 0, %s32
      %s52 = sphi 0, %s52
      %s54 = sphi 0, %s52
      %s55 = sphi 0, %s54
      %s69 = sphi 0, %s55
      %s73 = sphi 0, %s73
      %s75 = sphi 0, %s73
      %s76 = sphi 0, %s75
      %s90 = sphi 0, %s76
      %s94 = sphi 0, %s94
      %s96 = sphi 0, %s94
      %s97 = sphi 0, %s96
      %s111 = sphi 0, %s97
      %s115 = sphi 0, %s115
      %s117 = sphi 0, %s115
      %s118 = sphi 0, %s117
      %s132 = sphi 0, %s118
      %s136 = sphi 0, %s136
      %s138 = sphi 0, %s136
      %s139 = sphi 0, %s138
      %s153 = sphi 0, %s139
      %s157 = sphi 0, %s157
      %s159 = sphi 0, %s157
      %s160 = sphi 0, %s159
      %s174 = sphi 0, %s160
      %s180 = sphi 0, %s182
      %s183 = sphi 0, %s180
      %s184 = sphi 0, %s183
      %s200 = sphi 0, %s184
    $region4: #{tpu_custom_call.1} parent=1 // loop_header_branch
      %21 = sbr.rel (%p19) target = $region8
    $region5: #{tpu_custom_call.1} parent=1 // loop_body
      %s23 = ssub.s32 %s18, 1
      %s24 = ssub.s32 %s18, 2
      %s25 = sadd.s32 %s18, 1
      %s26 = ssub.s32 %s18, %s25
      %p27 = scmp.eq.s32.totalorder %s26, 0
      %s29 = sadd.s32 %s28, 1
      %s30 = scalar_select %p27, %s28, %s29
      %p33 = pneg %p27
      %p34 = scmp.eq.s32.totalorder %s18, 1
      %p35 = por %p33, %p34
      %p36 = scmp.ne.s32.totalorder %s28, %s31
      %p37 = scmp.eq.s32.totalorder %s18, 0
      %p38 = por %p36, %p37
      %p39 = scmp.ne.s32.totalorder %s28, %s31
      %p40 = scmp.eq.s32.totalorder %s23, 1
      %p41 = por %p39, %p40
      %p42 = scmp.ne.s32.totalorder %s31, %s32
      %p43 = scmp.eq.s32.totalorder %s23, 0
      %p44 = por %p42, %p43
      %p45 = scmp.ne.s32.totalorder %s31, %s32
      %p46 = scmp.eq.s32.totalorder %s24, 1
      %p47 = por %p45, %p46
      %p49 = scmp.ne.s32.totalorder %s32, %s48
      %p50 = scmp.eq.s32.totalorder %s24, 0
      %p51 = por %p49, %p50
      %s53 = sadd.s32 %s52, 1
      %p56 = scmp.eq.s32.totalorder %s18, 1
      %p57 = scmp.ne.s32.totalorder %s52, %s54
      %p58 = scmp.eq.s32.totalorder %s18, 0
      %p59 = por %p57, %p58
      %p60 = scmp.ne.s32.totalorder %s52, %s54
      %p61 = scmp.eq.s32.totalorder %s23, 1
      %p62 = por %p60, %p61
      %p63 = scmp.ne.s32.totalorder %s54, %s55
      %p64 = scmp.eq.s32.totalorder %s23, 0
      %p65 = por %p63, %p64
      %p66 = scmp.ne.s32.totalorder %s54, %s55
      %p67 = scmp.eq.s32.totalorder %s24, 1
      %p68 = por %p66, %p67
      %p70 = scmp.ne.s32.totalorder %s55, %s69
      %p71 = scmp.eq.s32.totalorder %s24, 0
      %p72 = por %p70, %p71
      %s74 = sadd.s32 %s73, 1
      %p77 = scmp.eq.s32.totalorder %s18, 1
      %p78 = scmp.ne.s32.totalorder %s73, %s75
      %p79 = scmp.eq.s32.totalorder %s18, 0
      %p80 = por %p78, %p79
      %p81 = scmp.ne.s32.totalorder %s73, %s75
      %p82 = scmp.eq.s32.totalorder %s23, 1
      %p83 = por %p81, %p82
      %p84 = scmp.ne.s32.totalorder %s75, %s76
      %p85 = scmp.eq.s32.totalorder %s23, 0
      %p86 = por %p84, %p85
      %p87 = scmp.ne.s32.totalorder %s75, %s76
      %p88 = scmp.eq.s32.totalorder %s24, 1
      %p89 = por %p87, %p88
      %p91 = scmp.ne.s32.totalorder %s76, %s90
      %p92 = scmp.eq.s32.totalorder %s24, 0
      %p93 = por %p91, %p92
      %s95 = sadd.s32 %s94, 1
      %p98 = scmp.eq.s32.totalorder %s18, 1
      %p99 = scmp.ne.s32.totalorder %s94, %s96
      %p100 = scmp.eq.s32.totalorder %s18, 0
      %p101 = por %p99, %p100
      %p102 = scmp.ne.s32.totalorder %s94, %s96
      %p103 = scmp.eq.s32.totalorder %s23, 1
      %p104 = por %p102, %p103
      %p105 = scmp.ne.s32.totalorder %s96, %s97
      %p106 = scmp.eq.s32.totalorder %s23, 0
      %p107 = por %p105, %p106
      %p108 = scmp.ne.s32.totalorder %s96, %s97
      %p109 = scmp.eq.s32.totalorder %s24, 1
      %p110 = por %p108, %p109
      %p112 = scmp.ne.s32.totalorder %s97, %s111
      %p113 = scmp.eq.s32.totalorder %s24, 0
      %p114 = por %p112, %p113
      %s116 = sadd.s32 %s115, 1
      %p119 = scmp.eq.s32.totalorder %s18, 1
      %p120 = scmp.ne.s32.totalorder %s115, %s117
      %p121 = scmp.eq.s32.totalorder %s18, 0
      %p122 = por %p120, %p121
      %p123 = scmp.ne.s32.totalorder %s115, %s117
      %p124 = scmp.eq.s32.totalorder %s23, 1
      %p125 = por %p123, %p124
      %p126 = scmp.ne.s32.totalorder %s117, %s118
      %p127 = scmp.eq.s32.totalorder %s23, 0
      %p128 = por %p126, %p127
      %p129 = scmp.ne.s32.totalorder %s117, %s118
      %p130 = scmp.eq.s32.totalorder %s24, 1
      %p131 = por %p129, %p130
      %p133 = scmp.ne.s32.totalorder %s118, %s132
      %p134 = scmp.eq.s32.totalorder %s24, 0
      %p135 = por %p133, %p134
      %s137 = sadd.s32 %s136, 1
      %p140 = scmp.eq.s32.totalorder %s18, 1
      %p141 = scmp.ne.s32.totalorder %s136, %s138
      %p142 = scmp.eq.s32.totalorder %s18, 0
      %p143 = por %p141, %p142
      %p144 = scmp.ne.s32.totalorder %s136, %s138
      %p145 = scmp.eq.s32.totalorder %s23, 1
      %p146 = por %p144, %p145
      %p147 = scmp.ne.s32.totalorder %s138, %s139
      %p148 = scmp.eq.s32.totalorder %s23, 0
      %p149 = por %p147, %p148
      %p150 = scmp.ne.s32.totalorder %s138, %s139
      %p151 = scmp.eq.s32.totalorder %s24, 1
      %p152 = por %p150, %p151
      %p154 = scmp.ne.s32.totalorder %s139, %s153
      %p155 = scmp.eq.s32.totalorder %s24, 0
      %p156 = por %p154, %p155
      %s158 = sadd.s32 %s157, 1
      %p161 = scmp.eq.s32.totalorder %s18, 1
      %p162 = scmp.ne.s32.totalorder %s157, %s159
      %p163 = scmp.eq.s32.totalorder %s18, 0
      %p164 = por %p162, %p163
      %p165 = scmp.ne.s32.totalorder %s157, %s159
      %p166 = scmp.eq.s32.totalorder %s23, 1
      %p167 = por %p165, %p166
      %p168 = scmp.ne.s32.totalorder %s159, %s160
      %p169 = scmp.eq.s32.totalorder %s23, 0
      %p170 = por %p168, %p169
      %p171 = scmp.ne.s32.totalorder %s159, %s160
      %p172 = scmp.eq.s32.totalorder %s24, 1
      %p173 = por %p171, %p172
      %p175 = scmp.ne.s32.totalorder %s160, %s174
      %p176 = scmp.eq.s32.totalorder %s24, 0
      %p177 = por %p175, %p176
      %s178 = ssub.s32 %s18, %s25
      %p179 = scmp.eq.s32.totalorder %s178, 0
      %s181 = sadd.s32 %s180, 1
      %s182 = scalar_select %p179, %s180, %s181
      %p185 = pneg %p179
      %p186 = scmp.eq.s32.totalorder %s18, 1
      %p187 = por %p185, %p186
      %p188 = scmp.ne.s32.totalorder %s180, %s183
      %p189 = scmp.eq.s32.totalorder %s18, 0
      %p190 = por %p188, %p189
      %p191 = scmp.ne.s32.totalorder %s180, %s183
      %p192 = scmp.eq.s32.totalorder %s23, 1
      %p193 = por %p191, %p192
      %p194 = scmp.ne.s32.totalorder %s183, %s184
      %p195 = scmp.eq.s32.totalorder %s23, 0
      %p196 = por %p194, %p195
      %p197 = scmp.ne.s32.totalorder %s183, %s184
      %p198 = scmp.eq.s32.totalorder %s24, 1
      %p199 = por %p197, %p198
      %p201 = scmp.ne.s32.totalorder %s184, %s200
      %p202 = scmp.eq.s32.totalorder %s24, 0
      %p203 = por %p201, %p202
      %p204 = scmp.le.s32.totalorder 1, %s18
      %p205 = scmp.lt.s32.totalorder %s18, 3
      %p206 = pnand %p204, %p205
      %p207 = pneg %p206
      // Predicated region
      $region9: #{tpu_custom_call.1} parent=5 // pred_check
        _
      $region10: #{tpu_custom_call.1} parent=5 // pred_check_branch
        %209 = sbr.rel (%p206) target = $region12
      $region11: #{tpu_custom_call.1} parent=5 // pred_region
        %s210 = ssub.s32 %s18, 1
        // Predicated region
        $region13: #{tpu_custom_call.1} parent=11 // pred_check
          %p211 = pneg %p65
        $region14: #{tpu_custom_call.1} parent=11 // pred_check_branch
          %213 = sbr.rel (%p211) target = $region16
        $region15: #{tpu_custom_call.1} parent=11 // pred_region
          %s215 = ssub.s32 768, 768
          %216 = vsyncadd [#allocation3], %s215
          %s217 = sshll.u32 [#allocation2], 4
          %s218 = int_to_ptr.vmem [resolvable:$true] %s217
          %223 = dma.hbm_to_vmem [thread:$0]  %s1, 768, %s218, [#allocation3], 128, 128, 8
        $region16: #{tpu_custom_call.1} parent=11 // pred_fallthru
          _
        // Predicated region
        $region17: #{tpu_custom_call.1} parent=11 // pred_check
          %p224 = pneg %p86
        $region18: #{tpu_custom_call.1} parent=11 // pred_check_branch
          %226 = sbr.rel (%p224) target = $region20
        $region19: #{tpu_custom_call.1} parent=11 // pred_region
          _
        $region20: #{tpu_custom_call.1} parent=11 // pred_fallthru
          _
        // Predicated region
        $region21: #{tpu_custom_call.1} parent=11 // pred_check
          %p227 = pneg %p107
        $region22: #{tpu_custom_call.1} parent=11 // pred_check_branch
          %229 = sbr.rel (%p227) target = $region24
        $region23: #{tpu_custom_call.1} parent=11 // pred_region
          _
        $region24: #{tpu_custom_call.1} parent=11 // pred_fallthru
          _
        // Predicated region
        $region25: #{tpu_custom_call.1} parent=11 // pred_check
          %p230 = pneg %p128
        $region26: #{tpu_custom_call.1} parent=11 // pred_check_branch
          %232 = sbr.rel (%p230) target = $region28
        $region27: #{tpu_custom_call.1} parent=11 // pred_region
          _
        $region28: #{tpu_custom_call.1} parent=11 // pred_fallthru
          _
        // Predicated region
        $region29: #{tpu_custom_call.1} parent=11 // pred_check
          %p233 = pneg %p149
        $region30: #{tpu_custom_call.1} parent=11 // pred_check_branch
          %235 = sbr.rel (%p233) target = $region32
        $region31: #{tpu_custom_call.1} parent=11 // pred_region
          %s237 = ssub.s32 2048, 2048
          %238 = vsyncadd [#allocation6], %s237
          %s239 = sshll.u32 [#allocation5], 4
          %s240 = int_to_ptr.vmem [resolvable:$true] %s239
          %245 = dma.hbm_to_vmem [thread:$0]  %s5, 2048, %s240, [#allocation6], 128, 128, 8
        $region32: #{tpu_custom_call.1} parent=11 // pred_fallthru
          _
        // Predicated region
        $region33: #{tpu_custom_call.1} parent=11 // pred_check
          %p246 = pneg %p170
        $region34: #{tpu_custom_call.1} parent=11 // pred_check_branch
          %248 = sbr.rel (%p246) target = $region36
        $region35: #{tpu_custom_call.1} parent=11 // pred_region
          _
        $region36: #{tpu_custom_call.1} parent=11 // pred_fallthru
          _
      $region12: #{tpu_custom_call.1} parent=5 // pred_fallthru
        _
      %p249 = scmp.lt.s32.totalorder %s18, 2
      // Predicated region
      $region37: #{tpu_custom_call.1} parent=5 // pred_check
        %p250 = pneg %p249
      $region38: #{tpu_custom_call.1} parent=5 // pred_check_branch
        %252 = sbr.rel (%p250) target = $region40
      $region39: #{tpu_custom_call.1} parent=5 // pred_region
        // Predicated region
        $region41: #{tpu_custom_call.1} parent=39 // pred_check
          %p253 = pneg %p38
        $region42: #{tpu_custom_call.1} parent=39 // pred_check_branch
          %255 = sbr.rel (%p253) target = $region44
        $region43: #{tpu_custom_call.1} parent=39 // pred_region
          %s256 = smul.u32 12, %s18
          %p257 = scmp.lt.s32.totalorder %s256, 23
          %s258 = scalar_select %p257, %s256, 23
          %s259 = smul.addr %s258, 8
          %s260 = scalar_lea.vmem %s0, %s259
          %s261 = smul.u32 12, %s18
        $region44: #{tpu_custom_call.1} parent=39 // pred_fallthru
          _
      $region40: #{tpu_custom_call.1} parent=5 // pred_fallthru
        _
      %p262 = scmp.le.s32.totalorder 1, %s18
      %p263 = scmp.lt.s32.totalorder %s18, 3
      %p264 = pnand %p262, %p263
      %p265 = pneg %p264
      // Predicated region
      $region45: #{tpu_custom_call.1} parent=5 // pred_check
        _
      $region46: #{tpu_custom_call.1} parent=5 // pred_check_branch
        %267 = sbr.rel (%p264) target = $region48
      $region47: #{tpu_custom_call.1} parent=5 // pred_region
        %s268 = ssub.s32 %s18, 1
        // Predicated region
        $region49: #{tpu_custom_call.1} parent=47 // pred_check
          %p269 = pneg %p65
        $region50: #{tpu_custom_call.1} parent=47 // pred_check_branch
          %271 = sbr.rel (%p269) target = $region52
        $region51: #{tpu_custom_call.1} parent=47 // pred_region
          %272 = dma.done [#allocation3], 768
        $region52: #{tpu_custom_call.1} parent=47 // pred_fallthru
          _
        // Predicated region
        $region53: #{tpu_custom_call.1} parent=47 // pred_check
          %p273 = pneg %p149
        $region54: #{tpu_custom_call.1} parent=47 // pred_check_branch
          %275 = sbr.rel (%p273) target = $region56
        $region55: #{tpu_custom_call.1} parent=47 // pred_region
          %276 = dma.done [#allocation6], 2048
        $region56: #{tpu_custom_call.1} parent=47 // pred_fallthru
          _
        %s277 = smul.u32 12, %s23
        %p278 = scmp.lt.s32.totalorder %s277, 23
        %s279 = scalar_select %p278, %s277, 23
        %s280 = smul.addr %s279, 8
        %s281 = scalar_lea.vmem %s0, %s280
        %p282 = pneg %p44
        %p283 = pneg %p41
        %p284 = pneg %p65
        %p285 = pneg %p62
        %p286 = pneg %p86
        %p287 = pneg %p83
        %p288 = pneg %p107
        %p289 = pneg %p104
        %p290 = pneg %p128
        %p291 = pneg %p125
        %p292 = pneg %p149
        %p293 = pneg %p146
        %p294 = pneg %p170
        %p295 = pneg %p167
        %p296 = pneg %p196
        %p297 = pneg %p193
        %s298 = sand.u32 %s183, 1
        %s299 = scalar_lea.sflag [#allocation4], %s298
        %s300 = sand.u32 %s183, 1
        %s301 = smul.addr %s300, 192
        %s302 = scalar_lea.vmem [#allocation7], %s301
        %s303 = smul.u32 12, %s23
        %p304 = scmp.lt.s32.totalorder %s303, 23
        %s305 = scalar_select %p304, %s303, 23
        %s306 = smul.addr %s305, 8
        %s307 = scalar_lea.vmem %s0, %s306
        %s308 = smul.u32 12, %s23
        %s309 = smul.u32 12, %s23
        %v311 = vld [vmem:[%s307] sm:$0xff]
        %v312 = vld [vmem:[%s307 + $0x8] sm:$0xff]
        %v313 = vld [vmem:[%s307 + $0x10] sm:$0xff]
        %v314 = vld [vmem:[%s307 + $0x18] sm:$0xff]
        %v315 = vld [vmem:[%s307 + $0x20] sm:$0xff]
        %v316 = vld [vmem:[%s307 + $0x28] sm:$0xff]
        %v317 = vld [vmem:[%s307 + $0x30] sm:$0xff]
        %v318 = vld [vmem:[%s307 + $0x38] sm:$0xff]
        %v319 = vld [vmem:[%s307 + $0x40] sm:$0xff]
        %v320 = vld [vmem:[%s307 + $0x48] sm:$0xff]
        %v321 = vld [vmem:[%s307 + $0x50] sm:$0xff]
        %v322 = vld [vmem:[%s307 + $0x58] sm:$0xff]
        %v323 = vlaneseq
        %v324 = vand.u32 %v323, 127
        %v325 = vadd.s32 %v324, 128
        %326 = vset.pattern.permute.xlu0 0
        %327 = vperm.xlu0 %326, %v311
        %v328 = vpop.permute.xlu0 %327
        %329 = vset.pattern.permute.xlu0 0
        %330 = vperm.xlu0 %329, %v312
        %v331 = vpop.permute.xlu0 %330
        %332 = vset.pattern.permute.xlu0 0
        %333 = vperm.xlu0 %332, %v313
        %v334 = vpop.permute.xlu0 %333
        %335 = vset.pattern.permute.xlu0 0
        %336 = vperm.xlu0 %335, %v314
        %v337 = vpop.permute.xlu0 %336
        %338 = vset.pattern.permute.xlu0 0
        %339 = vperm.xlu0 %338, %v315
        %v340 = vpop.permute.xlu0 %339
        %341 = vset.pattern.permute.xlu0 0
        %342 = vperm.xlu0 %341, %v316
        %v343 = vpop.permute.xlu0 %342
        %344 = vset.pattern.permute.xlu0 0
        %345 = vperm.xlu0 %344, %v317
        %v346 = vpop.permute.xlu0 %345
        %347 = vset.pattern.permute.xlu0 0
        %348 = vperm.xlu0 %347, %v318
        %v349 = vpop.permute.xlu0 %348
        %350 = vset.pattern.permute.xlu0 0
        %351 = vperm.xlu0 %350, %v319
        %v352 = vpop.permute.xlu0 %351
        %353 = vset.pattern.permute.xlu0 0
        %354 = vperm.xlu0 %353, %v320
        %v355 = vpop.permute.xlu0 %354
        %356 = vset.pattern.permute.xlu0 0
        %357 = vperm.xlu0 %356, %v321
        %v358 = vpop.permute.xlu0 %357
        %359 = vset.pattern.permute.xlu0 0
        %360 = vperm.xlu0 %359, %v322
        %v361 = vpop.permute.xlu0 %360
        %vm362 = vcmp.eq.s32.totalorder %v328, %v324
        %vm363 = vcmp.eq.s32.totalorder %v328, %v325
        %vm364 = vcmp.eq.s32.totalorder %v331, %v324
        %vm365 = vcmp.eq.s32.totalorder %v331, %v325
        %vm366 = vcmp.eq.s32.totalorder %v334, %v324
        %vm367 = vcmp.eq.s32.totalorder %v334, %v325
        %vm368 = vcmp.eq.s32.totalorder %v337, %v324
        %vm369 = vcmp.eq.s32.totalorder %v337, %v325
        %vm370 = vcmp.eq.s32.totalorder %v340, %v324
        %vm371 = vcmp.eq.s32.totalorder %v340, %v325
        %vm372 = vcmp.eq.s32.totalorder %v343, %v324
        %vm373 = vcmp.eq.s32.totalorder %v343, %v325
        %vm374 = vcmp.eq.s32.totalorder %v346, %v324
        %vm375 = vcmp.eq.s32.totalorder %v346, %v325
        %vm376 = vcmp.eq.s32.totalorder %v349, %v324
        %vm377 = vcmp.eq.s32.totalorder %v349, %v325
        %vm378 = vcmp.eq.s32.totalorder %v352, %v324
        %vm379 = vcmp.eq.s32.totalorder %v352, %v325
        %vm380 = vcmp.eq.s32.totalorder %v355, %v324
        %vm381 = vcmp.eq.s32.totalorder %v355, %v325
        %vm382 = vcmp.eq.s32.totalorder %v358, %v324
        %vm383 = vcmp.eq.s32.totalorder %v358, %v325
        %vm384 = vcmp.eq.s32.totalorder %v361, %v324
        %vm385 = vcmp.eq.s32.totalorder %v361, %v325
        %v386 = vsel %vm362, 1, 0
        %v387 = vsel %vm363, 1, 0
        %v388 = vsel %vm364, 1, 0
        %v389 = vsel %vm365, 1, 0
        %v390 = vsel %vm366, 1, 0
        %v391 = vsel %vm367, 1, 0
        %v392 = vsel %vm368, 1, 0
        %v393 = vsel %vm369, 1, 0
        %v394 = vsel %vm370, 1, 0
        %v395 = vsel %vm371, 1, 0
        %v396 = vsel %vm372, 1, 0
        %v397 = vsel %vm373, 1, 0
        %v398 = vsel %vm374, 1, 0
        %v399 = vsel %vm375, 1, 0
        %v400 = vsel %vm376, 1, 0
        %v401 = vsel %vm377, 1, 0
        %v402 = vsel %vm378, 1, 0
        %v403 = vsel %vm379, 1, 0
        %v404 = vsel %vm380, 1, 0
        %v405 = vsel %vm381, 1, 0
        %v406 = vsel %vm382, 1, 0
        %v407 = vsel %vm383, 1, 0
        %v408 = vsel %vm384, 1, 0
        %v409 = vsel %vm385, 1, 0
        %v410 = vcvt.s32.f32 %v386
        %v411 = vcvt.s32.f32 %v387
        %v412 = vcvt.s32.f32 %v388
        %v413 = vcvt.s32.f32 %v389
        %v414 = vcvt.s32.f32 %v390
        %v415 = vcvt.s32.f32 %v391
        %v416 = vcvt.s32.f32 %v392
        %v417 = vcvt.s32.f32 %v393
        %v418 = vcvt.s32.f32 %v394
        %v419 = vcvt.s32.f32 %v395
        %v420 = vcvt.s32.f32 %v396
        %v421 = vcvt.s32.f32 %v397
        %v422 = vcvt.s32.f32 %v398
        %v423 = vcvt.s32.f32 %v399
        %v424 = vcvt.s32.f32 %v400
        %v425 = vcvt.s32.f32 %v401
        %v426 = vcvt.s32.f32 %v402
        %v427 = vcvt.s32.f32 %v403
        %v428 = vcvt.s32.f32 %v404
        %v429 = vcvt.s32.f32 %v405
        %v430 = vcvt.s32.f32 %v406
        %v431 = vcvt.s32.f32 %v407
        %v432 = vcvt.s32.f32 %v408
        %v433 = vcvt.s32.f32 %v409
        %v434 = vpack.c.bf16 %v412, %v410
        %v435 = vpack.c.bf16 %v413, %v411
        %v436 = vpack.c.bf16 %v416, %v414
        %v437 = vpack.c.bf16 %v417, %v415
        %v438 = vpack.c.bf16 %v420, %v418
        %v439 = vpack.c.bf16 %v421, %v419
        %v440 = vpack.c.bf16 %v424, %v422
        %v441 = vpack.c.bf16 %v425, %v423
        %v442 = vpack.c.bf16 %v428, %v426
        %v443 = vpack.c.bf16 %v429, %v427
        %v444 = vpack.c.bf16 %v432, %v430
        %v445 = vpack.c.bf16 %v433, %v431
        %v446 = vld [vmem:[%s2] sm:$0xf]
        %v447 = vld [vmem:[%s2 + $0x4] sm:$0xf]
        %v448 = vld [vmem:[%s2 + $0x8] sm:$0xf]
        %v449 = vld [vmem:[%s2 + $0xc] sm:$0xf]
        %v450 = vld [vmem:[%s2 + $0x10] sm:$0xf]
        %v451 = vld [vmem:[%s2 + $0x14] sm:$0xf]
        %v452 = vld [vmem:[%s2 + $0x18] sm:$0xf]
        %v453 = vld [vmem:[%s2 + $0x1c] sm:$0xf]
        %v454 = vld [vmem:[%s2 + $0x20] sm:$0xf]
        %v455 = vld [vmem:[%s2 + $0x24] sm:$0xf]
        %v456 = vld [vmem:[%s2 + $0x28] sm:$0xf]
        %v457 = vld [vmem:[%s2 + $0x2c] sm:$0xf]
        %v458 = vld [vmem:[%s2 + $0x30] sm:$0xf]
        %v459 = vld [vmem:[%s2 + $0x34] sm:$0xf]
        %v460 = vld [vmem:[%s2 + $0x38] sm:$0xf]
        %v461 = vld [vmem:[%s2 + $0x3c] sm:$0xf]
        %v462 = vld [vmem:[%s2 + $0x40] sm:$0xf]
        %v463 = vld [vmem:[%s2 + $0x44] sm:$0xf]
        %v464 = vld [vmem:[%s2 + $0x48] sm:$0xf]
        %v465 = vld [vmem:[%s2 + $0x4c] sm:$0xf]
        %v466 = vld [vmem:[%s2 + $0x50] sm:$0xf]
        %v467 = vld [vmem:[%s2 + $0x54] sm:$0xf]
        %v468 = vld [vmem:[%s2 + $0x58] sm:$0xf]
        %v469 = vld [vmem:[%s2 + $0x5c] sm:$0xf]
        %v470 = vld [vmem:[%s2 + $0x60] sm:$0xf]
        %v471 = vld [vmem:[%s2 + $0x64] sm:$0xf]
        %v472 = vld [vmem:[%s2 + $0x68] sm:$0xf]
        %v473 = vld [vmem:[%s2 + $0x6c] sm:$0xf]
        %v474 = vld [vmem:[%s2 + $0x70] sm:$0xf]
        %v475 = vld [vmem:[%s2 + $0x74] sm:$0xf]
        %v476 = vld [vmem:[%s2 + $0x78] sm:$0xf]
        %v477 = vld [vmem:[%s2 + $0x7c] sm:$0xf]
        %v510 = vunpack.c.l.b16 %v446
        %v511 = vunpack.c.l.b16 %v447
        %v512 = vunpack.c.l.b16 %v448
        %v513 = vunpack.c.l.b16 %v449
        %v514 = vunpack.c.l.b16 %v450
        %v515 = vunpack.c.l.b16 %v451
        %v516 = vunpack.c.l.b16 %v452
        %v517 = vunpack.c.l.b16 %v453
        %v518 = vunpack.c.l.b16 %v454
        %v519 = vunpack.c.l.b16 %v455
        %v520 = vunpack.c.l.b16 %v456
        %v521 = vunpack.c.l.b16 %v457
        %v522 = vunpack.c.l.b16 %v458
        %v523 = vunpack.c.l.b16 %v459
        %v524 = vunpack.c.l.b16 %v460
        %v525 = vunpack.c.l.b16 %v461
        %v526 = vunpack.c.l.b16 %v462
        %v527 = vunpack.c.l.b16 %v463
        %v528 = vunpack.c.l.b16 %v464
        %v529 = vunpack.c.l.b16 %v465
        %v530 = vunpack.c.l.b16 %v466
        %v531 = vunpack.c.l.b16 %v467
        %v532 = vunpack.c.l.b16 %v468
        %v533 = vunpack.c.l.b16 %v469
        %v534 = vunpack.c.l.b16 %v470
        %v535 = vunpack.c.l.b16 %v471
        %v536 = vunpack.c.l.b16 %v472
        %v537 = vunpack.c.l.b16 %v473
        %v538 = vunpack.c.l.b16 %v474
        %v539 = vunpack.c.l.b16 %v475
        %v540 = vunpack.c.l.b16 %v476
        %v541 = vunpack.c.l.b16 %v477
        %v542 = vpack.c.b16 %v511, %v510
        %v543 = vpack.c.b16 %v513, %v512
        %v544 = vpack.c.b16 %v515, %v514
        %v545 = vpack.c.b16 %v517, %v516
        %v546 = vpack.c.b16 %v519, %v518
        %v547 = vpack.c.b16 %v521, %v520
        %v548 = vpack.c.b16 %v523, %v522
        %v549 = vpack.c.b16 %v525, %v524
        %v550 = vpack.c.b16 %v527, %v526
        %v551 = vpack.c.b16 %v529, %v528
        %v552 = vpack.c.b16 %v531, %v530
        %v553 = vpack.c.b16 %v533, %v532
        %v554 = vpack.c.b16 %v535, %v534
        %v555 = vpack.c.b16 %v537, %v536
        %v556 = vpack.c.b16 %v539, %v538
        %v557 = vpack.c.b16 %v541, %v540
        %574 = vmatprep.subr.bf16.mxu0 0
        %575 = vmatpush1.bf16.msra.mxu0 %v549
        %576 = vmatprep.subr.bf16.mxu0 0
        %577 = vmatpush1.bf16.msra.mxu0 %v548
        %578 = vmatprep.subr.bf16.mxu0 0
        %579 = vmatpush1.bf16.msra.mxu0 %v547
        %580 = vmatprep.subr.bf16.mxu0 0
        %581 = vmatpush1.bf16.msra.mxu0 %v546
        %582 = vmatprep.subr.bf16.mxu0 0
        %583 = vmatpush1.bf16.msra.mxu0 %v545
        %584 = vmatprep.subr.bf16.mxu0 0
        %585 = vmatpush1.bf16.msra.mxu0 %v544
        %586 = vmatprep.subr.bf16.mxu0 0
        %587 = vmatpush1.bf16.msra.mxu0 %v543
        %588 = vmatprep.subr.bf16.mxu0 0
        %589 = vmatpush1.bf16.msra.mxu0 %v542
        %590 = vmatprep.subr.bf16.mxu0 0
        %591 = vmatpush2.bf16.msra.mxu0 %v557
        %592 = vmatprep.subr.bf16.mxu0 0
        %593 = vmatpush2.bf16.msra.mxu0 %v556
        %594 = vmatprep.subr.bf16.mxu0 0
        %595 = vmatpush2.bf16.msra.mxu0 %v555
        %596 = vmatprep.subr.bf16.mxu0 0
        %597 = vmatpush2.bf16.msra.mxu0 %v554
        %598 = vmatprep.subr.bf16.mxu0 0
        %599 = vmatpush2.bf16.msra.mxu0 %v553
        %600 = vmatprep.subr.bf16.mxu0 0
        %601 = vmatpush2.bf16.msra.mxu0 %v552
        %602 = vmatprep.subr.bf16.mxu0 0
        %603 = vmatpush2.bf16.msra.mxu0 %v551
        %604 = vmatprep.subr.bf16.mxu0 0
        %605 = vmatpush2.bf16.msra.mxu0 %v550
        %606 = vmatprep.mubr.bf16.mxu0 %v435
        %607 = vmatmul.mubr.bf16.gmra.mxu0 %v434
        %v608 = vpop.f32.mrf.mxu0
        %v609 = vadd.f32 0.0, %v608
        %v610 = vpop.f32.mrf.mxu0
        %v611 = vpop.f32.mrf.mxu0
        %v612 = vadd.f32 0.0, %v611
        %v613 = vpop.f32.mrf.mxu0
        %614 = vmatprep.mubr.bf16.mxu0 %v437
        %615 = vmatmul.mubr.bf16.gmra.mxu0 %v436
        %v616 = vpop.f32.mrf.mxu0
        %v617 = vadd.f32 0.0, %v616
        %v618 = vpop.f32.mrf.mxu0
        %v619 = vpop.f32.mrf.mxu0
        %v620 = vadd.f32 0.0, %v619
        %v621 = vpop.f32.mrf.mxu0
        %622 = vmatprep.mubr.bf16.mxu0 %v439
        %623 = vmatmul.mubr.bf16.gmra.mxu0 %v438
        %v624 = vpop.f32.mrf.mxu0
        %v625 = vadd.f32 0.0, %v624
        %v626 = vpop.f32.mrf.mxu0
        %v627 = vpop.f32.mrf.mxu0
        %v628 = vadd.f32 0.0, %v627
        %v629 = vpop.f32.mrf.mxu0
        %630 = vmatprep.mubr.bf16.mxu0 %v441
        %631 = vmatmul.mubr.bf16.gmra.mxu0 %v440
        %v632 = vpop.f32.mrf.mxu0
        %v633 = vadd.f32 0.0, %v632
        %v634 = vpop.f32.mrf.mxu0
        %v635 = vpop.f32.mrf.mxu0
        %v636 = vadd.f32 0.0, %v635
        %v637 = vpop.f32.mrf.mxu0
        %638 = vmatprep.mubr.bf16.mxu0 %v443
        %639 = vmatmul.mubr.bf16.gmra.mxu0 %v442
        %v640 = vpop.f32.mrf.mxu0
        %v641 = vadd.f32 0.0, %v640
        %v642 = vpop.f32.mrf.mxu0
        %v643 = vpop.f32.mrf.mxu0
        %v644 = vadd.f32 0.0, %v643
        %v645 = vpop.f32.mrf.mxu0
        %646 = vmatprep.mubr.bf16.mxu0 %v445
        %647 = vmatmul.mubr.bf16.gmra.mxu0 %v444
        %v648 = vpop.f32.mrf.mxu0
        %v649 = vadd.f32 0.0, %v648
        %v650 = vpop.f32.mrf.mxu0
        %v651 = vpop.f32.mrf.mxu0
        %v652 = vadd.f32 0.0, %v651
        %v653 = vpop.f32.mrf.mxu0
        %654 = vdwg.mxu0
        %v655 = vmul.f32 %v609, %v609
        %v656 = vmul.f32 %v612, %v612
        %v657 = vmul.f32 %v617, %v617
        %v658 = vmul.f32 %v620, %v620
        %v659 = vmul.f32 %v625, %v625
        %v660 = vmul.f32 %v628, %v628
        %v661 = vmul.f32 %v633, %v633
        %v662 = vmul.f32 %v636, %v636
        %v663 = vmul.f32 %v641, %v641
        %v664 = vmul.f32 %v644, %v644
        %v665 = vmul.f32 %v649, %v649
        %v666 = vmul.f32 %v652, %v652
        %667 = vadd.xlane.f32.xlu0 %v655
        %v668 = vpop.xlane.xlu0 %667
        %669 = vadd.xlane.f32.xlu0 %v656
        %v670 = vpop.xlane.xlu0 %669
        %671 = vadd.xlane.f32.xlu0 %v657
        %v672 = vpop.xlane.xlu0 %671
        %673 = vadd.xlane.f32.xlu0 %v658
        %v674 = vpop.xlane.xlu0 %673
        %675 = vadd.xlane.f32.xlu0 %v659
        %v676 = vpop.xlane.xlu0 %675
        %677 = vadd.xlane.f32.xlu0 %v660
        %v678 = vpop.xlane.xlu0 %677
        %679 = vadd.xlane.f32.xlu0 %v661
        %v680 = vpop.xlane.xlu0 %679
        %681 = vadd.xlane.f32.xlu0 %v662
        %v682 = vpop.xlane.xlu0 %681
        %683 = vadd.xlane.f32.xlu0 %v663
        %v684 = vpop.xlane.xlu0 %683
        %685 = vadd.xlane.f32.xlu0 %v664
        %v686 = vpop.xlane.xlu0 %685
        %687 = vadd.xlane.f32.xlu0 %v665
        %v688 = vpop.xlane.xlu0 %687
        %689 = vadd.xlane.f32.xlu0 %v666
        %v690 = vpop.xlane.xlu0 %689
        %v691 = vrcp.pop 128.0
        %v692 = vmul.f32 %v668, %v691
        %v693 = vmul.f32 %v670, %v691
        %v694 = vmul.f32 %v672, %v691
        %v695 = vmul.f32 %v674, %v691
        %v696 = vmul.f32 %v676, %v691
        %v697 = vmul.f32 %v678, %v691
        %v698 = vmul.f32 %v680, %v691
        %v699 = vmul.f32 %v682, %v691
        %v700 = vmul.f32 %v684, %v691
        %v701 = vmul.f32 %v686, %v691
        %v702 = vmul.f32 %v688, %v691
        %v703 = vmul.f32 %v690, %v691
        %v704 = vadd.f32 %v692, 1e-06
        %v705 = vadd.f32 %v693, 1e-06
        %v706 = vadd.f32 %v694, 1e-06
        %v707 = vadd.f32 %v695, 1e-06
        %v708 = vadd.f32 %v696, 1e-06
        %v709 = vadd.f32 %v697, 1e-06
        %v710 = vadd.f32 %v698, 1e-06
        %v711 = vadd.f32 %v699, 1e-06
        %v712 = vadd.f32 %v700, 1e-06
        %v713 = vadd.f32 %v701, 1e-06
        %v714 = vadd.f32 %v702, 1e-06
        %v715 = vadd.f32 %v703, 1e-06
        %v716 = vrsqrt.pop %v704
        %v717 = vrsqrt.pop %v705
        %v718 = vrsqrt.pop %v706
        %v719 = vrsqrt.pop %v707
        %v720 = vrsqrt.pop %v708
        %v721 = vrsqrt.pop %v709
        %v722 = vrsqrt.pop %v710
        %v723 = vrsqrt.pop %v711
        %v724 = vrsqrt.pop %v712
        %v725 = vrsqrt.pop %v713
        %v726 = vrsqrt.pop %v714
        %v727 = vrsqrt.pop %v715
        %v728 = vmul.f32 %v609, %v716
        %v729 = vmul.f32 %v612, %v717
        %v730 = vmul.f32 %v617, %v718
        %v731 = vmul.f32 %v620, %v719
        %v732 = vmul.f32 %v625, %v720
        %v733 = vmul.f32 %v628, %v721
        %v734 = vmul.f32 %v633, %v722
        %v735 = vmul.f32 %v636, %v723
        %v736 = vmul.f32 %v641, %v724
        %v737 = vmul.f32 %v644, %v725
        %v738 = vmul.f32 %v649, %v726
        %v739 = vmul.f32 %v652, %v727
        %v740 = vld [vmem:[#allocation2] sm:$0xff]
        %v741 = vld [vmem:[#allocation2 + $0x8] sm:$0xff]
        %v742 = vld [vmem:[#allocation2 + $0x10] sm:$0xff]
        %v743 = vld [vmem:[#allocation2 + $0x18] sm:$0xff]
        %v744 = vld [vmem:[#allocation2 + $0x20] sm:$0xff]
        %v745 = vld [vmem:[#allocation2 + $0x28] sm:$0xff]
        %v746 = vmul.f32 %v728, %v740
        %v747 = vmul.f32 %v729, %v741
        %v748 = vmul.f32 %v730, %v742
        %v749 = vmul.f32 %v731, %v743
        %v750 = vmul.f32 %v732, %v744
        %v751 = vmul.f32 %v733, %v745
        %v752 = vmul.f32 %v734, %v740
        %v753 = vmul.f32 %v735, %v741
        %v754 = vmul.f32 %v736, %v742
        %v755 = vmul.f32 %v737, %v743
        %v756 = vmul.f32 %v738, %v744
        %v757 = vmul.f32 %v739, %v745
        %v758 = vpack.c.bf16 %v747, %v746
        %v759 = vpack.c.bf16 %v749, %v748
        %v760 = vpack.c.bf16 %v751, %v750
        %v761 = vpack.c.bf16 %v753, %v752
        %v762 = vpack.c.bf16 %v755, %v754
        %v763 = vpack.c.bf16 %v757, %v756
        %v764 = vld [vmem:[%s3] sm:$0xf]
        %v765 = vld [vmem:[%s3 + $0x4] sm:$0xf]
        %v766 = vld [vmem:[%s3 + $0x8] sm:$0xf]
        %v767 = vld [vmem:[%s3 + $0xc] sm:$0xf]
        %v768 = vld [vmem:[%s3 + $0x10] sm:$0xf]
        %v769 = vld [vmem:[%s3 + $0x14] sm:$0xf]
        %v770 = vld [vmem:[%s3 + $0x18] sm:$0xf]
        %v771 = vld [vmem:[%s3 + $0x1c] sm:$0xf]
        %v772 = vld [vmem:[%s3 + $0x20] sm:$0xf]
        %v773 = vld [vmem:[%s3 + $0x24] sm:$0xf]
        %v774 = vld [vmem:[%s3 + $0x28] sm:$0xf]
        %v775 = vld [vmem:[%s3 + $0x2c] sm:$0xf]
        %v776 = vld [vmem:[%s3 + $0x30] sm:$0xf]
        %v777 = vld [vmem:[%s3 + $0x34] sm:$0xf]
        %v778 = vld [vmem:[%s3 + $0x38] sm:$0xf]
        %v779 = vld [vmem:[%s3 + $0x3c] sm:$0xf]
        %v780 = vld [vmem:[%s4] sm:$0x1]
        %v782 = vlaneseq
        %v783 = vshrl.u32 %v782, 7
        %v784 = vsub.s32 0, %v783
        %v785 = vrot.slane %v780, %v784
        %v803 = vunpack.c.l.b16 %v764
        %v804 = vunpack.c.l.b16 %v765
        %v805 = vunpack.c.l.b16 %v766
        %v806 = vunpack.c.l.b16 %v767
        %v807 = vunpack.c.l.b16 %v768
        %v808 = vunpack.c.l.b16 %v769
        %v809 = vunpack.c.l.b16 %v770
        %v810 = vunpack.c.l.b16 %v771
        %v811 = vunpack.c.l.b16 %v772
        %v812 = vunpack.c.l.b16 %v773
        %v813 = vunpack.c.l.b16 %v774
        %v814 = vunpack.c.l.b16 %v775
        %v815 = vunpack.c.l.b16 %v776
        %v816 = vunpack.c.l.b16 %v777
        %v817 = vunpack.c.l.b16 %v778
        %v818 = vunpack.c.l.b16 %v779
        %v819 = vpack.c.b16 %v804, %v803
        %v820 = vpack.c.b16 %v806, %v805
        %v821 = vpack.c.b16 %v808, %v807
        %v822 = vpack.c.b16 %v810, %v809
        %v823 = vpack.c.b16 %v812, %v811
        %v824 = vpack.c.b16 %v814, %v813
        %v825 = vpack.c.b16 %v816, %v815
        %v826 = vpack.c.b16 %v818, %v817
        %835 = vmatprep.subr.bf16.mxu0 0
        %836 = vmatpush1.bf16.msra.mxu0 %v826
        %837 = vmatprep.subr.bf16.mxu0 0
        %838 = vmatpush1.bf16.msra.mxu0 %v825
        %839 = vmatprep.subr.bf16.mxu0 0
        %840 = vmatpush1.bf16.msra.mxu0 %v824
        %841 = vmatprep.subr.bf16.mxu0 0
        %842 = vmatpush1.bf16.msra.mxu0 %v823
        %843 = vmatprep.subr.bf16.mxu0 0
        %844 = vmatpush1.bf16.msra.mxu0 %v822
        %845 = vmatprep.subr.bf16.mxu0 0
        %846 = vmatpush1.bf16.msra.mxu0 %v821
        %847 = vmatprep.subr.bf16.mxu0 0
        %848 = vmatpush1.bf16.msra.mxu0 %v820
        %849 = vmatprep.subr.bf16.mxu0 0
        %850 = vmatpush1.bf16.msra.mxu0 %v819
        %851 = vmatprep.subr.bf16.mxu0 0
        %852 = vmatpush2.bf16.msra.mxu0 0
        %853 = vmatprep.subr.bf16.mxu0 0
        %854 = vmatpush2.bf16.msra.mxu0 0
        %855 = vmatprep.subr.bf16.mxu0 0
        %856 = vmatpush2.bf16.msra.mxu0 0
        %857 = vmatprep.subr.bf16.mxu0 0
        %858 = vmatpush2.bf16.msra.mxu0 0
        %859 = vmatprep.subr.bf16.mxu0 0
        %860 = vmatpush2.bf16.msra.mxu0 0
        %861 = vmatprep.subr.bf16.mxu0 0
        %862 = vmatpush2.bf16.msra.mxu0 0
        %863 = vmatprep.subr.bf16.mxu0 0
        %864 = vmatpush2.bf16.msra.mxu0 0
        %865 = vmatprep.subr.bf16.mxu0 0
        %866 = vmatpush2.bf16.msra.mxu0 0
        %867 = vmatprep.mubr.bf16.mxu0 0
        %868 = vmatmul.mubr.bf16.gmra.mxu0 %v758
        %v869 = vpop.f32.mrf.mxu0
        %v870 = vadd.f32 %v785, %v869
        %v871 = vpop.f32.mrf.mxu0
        %v872 = vpop.f32.mrf.mxu0
        %v873 = vadd.f32 %v785, %v872
        %v874 = vpop.f32.mrf.mxu0
        %875 = vmatprep.mubr.bf16.mxu0 0
        %876 = vmatmul.mubr.bf16.gmra.mxu0 %v759
        %v877 = vpop.f32.mrf.mxu0
        %v878 = vadd.f32 %v785, %v877
        %v879 = vpop.f32.mrf.mxu0
        %v880 = vpop.f32.mrf.mxu0
        %v881 = vadd.f32 %v785, %v880
        %v882 = vpop.f32.mrf.mxu0
        %883 = vmatprep.mubr.bf16.mxu0 0
        %884 = vmatmul.mubr.bf16.gmra.mxu0 %v760
        %v885 = vpop.f32.mrf.mxu0
        %v886 = vadd.f32 %v785, %v885
        %v887 = vpop.f32.mrf.mxu0
        %v888 = vpop.f32.mrf.mxu0
        %v889 = vadd.f32 %v785, %v888
        %v890 = vpop.f32.mrf.mxu0
        %891 = vmatprep.mubr.bf16.mxu0 0
        %892 = vmatmul.mubr.bf16.gmra.mxu0 %v761
        %v893 = vpop.f32.mrf.mxu0
        %v894 = vadd.f32 %v785, %v893
        %v895 = vpop.f32.mrf.mxu0
        %v896 = vpop.f32.mrf.mxu0
        %v897 = vadd.f32 %v785, %v896
        %v898 = vpop.f32.mrf.mxu0
        %899 = vmatprep.mubr.bf16.mxu0 0
        %900 = vmatmul.mubr.bf16.gmra.mxu0 %v762
        %v901 = vpop.f32.mrf.mxu0
        %v902 = vadd.f32 %v785, %v901
        %v903 = vpop.f32.mrf.mxu0
        %v904 = vpop.f32.mrf.mxu0
        %v905 = vadd.f32 %v785, %v904
        %v906 = vpop.f32.mrf.mxu0
        %907 = vmatprep.mubr.bf16.mxu0 0
        %908 = vmatmul.mubr.bf16.gmra.mxu0 %v763
        %v909 = vpop.f32.mrf.mxu0
        %v910 = vadd.f32 %v785, %v909
        %v911 = vpop.f32.mrf.mxu0
        %v912 = vpop.f32.mrf.mxu0
        %v913 = vadd.f32 %v785, %v912
        %v914 = vpop.f32.mrf.mxu0
        %915 = vdwg.mxu0
        %v916 = vmax.f32 %v870, 0.0
        %v917 = vmax.f32 %v873, 0.0
        %v918 = vmax.f32 %v878, 0.0
        %v919 = vmax.f32 %v881, 0.0
        %v920 = vmax.f32 %v886, 0.0
        %v921 = vmax.f32 %v889, 0.0
        %v922 = vmax.f32 %v894, 0.0
        %v923 = vmax.f32 %v897, 0.0
        %v924 = vmax.f32 %v902, 0.0
        %v925 = vmax.f32 %v905, 0.0
        %v926 = vmax.f32 %v910, 0.0
        %v927 = vmax.f32 %v913, 0.0
        %v928 = vpack.c.bf16 %v917, %v916
        %v929 = vpack.c.bf16 %v919, %v918
        %v930 = vpack.c.bf16 %v921, %v920
        %v931 = vpack.c.bf16 %v923, %v922
        %v932 = vpack.c.bf16 %v925, %v924
        %v933 = vpack.c.bf16 %v927, %v926
        %v934 = vld [vmem:[#allocation5] sm:$0xff]
        %v935 = vld [vmem:[#allocation5 + $0x8] sm:$0xff]
        %v936 = vld [vmem:[#allocation5 + $0x10] sm:$0xff]
        %v937 = vld [vmem:[#allocation5 + $0x18] sm:$0xff]
        %v938 = vld [vmem:[#allocation5 + $0x20] sm:$0xff]
        %v939 = vld [vmem:[#allocation5 + $0x28] sm:$0xff]
        %v940 = vld [vmem:[#allocation5 + $0x30] sm:$0xff]
        %v941 = vld [vmem:[#allocation5 + $0x38] sm:$0xff]
        %v942 = vld [vmem:[#allocation5 + $0x40] sm:$0xff]
        %v943 = vld [vmem:[#allocation5 + $0x48] sm:$0xff]
        %v944 = vld [vmem:[#allocation5 + $0x50] sm:$0xff]
        %v945 = vld [vmem:[#allocation5 + $0x58] sm:$0xff]
        %v946 = vld [vmem:[#allocation5 + $0x60] sm:$0xff]
        %v947 = vld [vmem:[#allocation5 + $0x68] sm:$0xff]
        %v948 = vld [vmem:[#allocation5 + $0x70] sm:$0xff]
        %v949 = vld [vmem:[#allocation5 + $0x78] sm:$0xff]
        %v950 = vld [vmem:[%s6] sm:$0x3]
        %v952 = vlaneseq
        %v953 = vshrl.u32 %v952, 7
        %v954 = vsub.s32 0, %v953
        %v955 = vrot.slane %v950, %v954
        %v956 = vlaneseq
        %v957 = vshrl.u32 %v956, 7
        %v958 = vsub.s32 1, %v957
        %v959 = vrot.slane %v950, %v958
        %v978 = vunpack.c.l.b16 %v934
        %v979 = vunpack.c.h.b16 %v934
        %v980 = vunpack.c.l.b16 %v935
        %v981 = vunpack.c.h.b16 %v935
        %v982 = vunpack.c.l.b16 %v936
        %v983 = vunpack.c.h.b16 %v936
        %v984 = vunpack.c.l.b16 %v937
        %v985 = vunpack.c.h.b16 %v937
        %v986 = vunpack.c.l.b16 %v938
        %v987 = vunpack.c.h.b16 %v938
        %v988 = vunpack.c.l.b16 %v939
        %v989 = vunpack.c.h.b16 %v939
        %v990 = vunpack.c.l.b16 %v940
        %v991 = vunpack.c.h.b16 %v940
        %v992 = vunpack.c.l.b16 %v941
        %v993 = vunpack.c.h.b16 %v941
        %v994 = vunpack.c.l.b16 %v942
        %v995 = vunpack.c.h.b16 %v942
        %v996 = vunpack.c.l.b16 %v943
        %v997 = vunpack.c.h.b16 %v943
        %v998 = vunpack.c.l.b16 %v944
        %v999 = vunpack.c.h.b16 %v944
        %v1000 = vunpack.c.l.b16 %v945
        %v1001 = vunpack.c.h.b16 %v945
        %v1002 = vunpack.c.l.b16 %v946
        %v1003 = vunpack.c.h.b16 %v946
        %v1004 = vunpack.c.l.b16 %v947
        %v1005 = vunpack.c.h.b16 %v947
        %v1006 = vunpack.c.l.b16 %v948
        %v1007 = vunpack.c.h.b16 %v948
        %v1008 = vunpack.c.l.b16 %v949
        %v1009 = vunpack.c.h.b16 %v949
        %v1010 = vpack.c.b16 %v980, %v978
        %v1011 = vpack.c.b16 %v981, %v979
        %v1012 = vpack.c.b16 %v984, %v982
        %v1013 = vpack.c.b16 %v985, %v983
        %v1014 = vpack.c.b16 %v988, %v986
        %v1015 = vpack.c.b16 %v989, %v987
        %v1016 = vpack.c.b16 %v992, %v990
        %v1017 = vpack.c.b16 %v993, %v991
        %v1018 = vpack.c.b16 %v996, %v994
        %v1019 = vpack.c.b16 %v997, %v995
        %v1020 = vpack.c.b16 %v1000, %v998
        %v1021 = vpack.c.b16 %v1001, %v999
        %v1022 = vpack.c.b16 %v1004, %v1002
        %v1023 = vpack.c.b16 %v1005, %v1003
        %v1024 = vpack.c.b16 %v1008, %v1006
        %v1025 = vpack.c.b16 %v1009, %v1007
        %1042 = vmatprep.subr.bf16.mxu0 %v1025
        %1043 = vmatpush1.bf16.msra.mxu0 %v1024
        %1044 = vmatprep.subr.bf16.mxu0 %v1023
        %1045 = vmatpush1.bf16.msra.mxu0 %v1022
        %1046 = vmatprep.subr.bf16.mxu0 %v1021
        %1047 = vmatpush1.bf16.msra.mxu0 %v1020
        %1048 = vmatprep.subr.bf16.mxu0 %v1019
        %1049 = vmatpush1.bf16.msra.mxu0 %v1018
        %1050 = vmatprep.subr.bf16.mxu0 %v1017
        %1051 = vmatpush1.bf16.msra.mxu0 %v1016
        %1052 = vmatprep.subr.bf16.mxu0 %v1015
        %1053 = vmatpush1.bf16.msra.mxu0 %v1014
        %1054 = vmatprep.subr.bf16.mxu0 %v1013
        %1055 = vmatpush1.bf16.msra.mxu0 %v1012
        %1056 = vmatprep.subr.bf16.mxu0 %v1011
        %1057 = vmatpush1.bf16.msra.mxu0 %v1010
        %1058 = vmatprep.subr.bf16.mxu0 0
        %1059 = vmatpush2.bf16.msra.mxu0 0
        %1060 = vmatprep.subr.bf16.mxu0 0
        %1061 = vmatpush2.bf16.msra.mxu0 0
        %1062 = vmatprep.subr.bf16.mxu0 0
        %1063 = vmatpush2.bf16.msra.mxu0 0
        %1064 = vmatprep.subr.bf16.mxu0 0
        %1065 = vmatpush2.bf16.msra.mxu0 0
        %1066 = vmatprep.subr.bf16.mxu0 0
        %1067 = vmatpush2.bf16.msra.mxu0 0
        %1068 = vmatprep.subr.bf16.mxu0 0
        %1069 = vmatpush2.bf16.msra.mxu0 0
        %1070 = vmatprep.subr.bf16.mxu0 0
        %1071 = vmatpush2.bf16.msra.mxu0 0
        %1072 = vmatprep.subr.bf16.mxu0 0
        %1073 = vmatpush2.bf16.msra.mxu0 0
        %1074 = vmatprep.mubr.bf16.mxu0 0
        %1075 = vmatmul.mubr.bf16.gmra.mxu0 %v928
        %v1076 = vpop.f32.mrf.mxu0
        %v1077 = vadd.f32 %v955, %v1076
        %v1078 = vpop.f32.mrf.mxu0
        %v1079 = vadd.f32 %v959, %v1078
        %v1080 = vpop.f32.mrf.mxu0
        %v1081 = vadd.f32 %v955, %v1080
        %v1082 = vpop.f32.mrf.mxu0
        %v1083 = vadd.f32 %v959, %v1082
        %1084 = vmatprep.mubr.bf16.mxu0 0
        %1085 = vmatmul.mubr.bf16.gmra.mxu0 %v929
        %v1086 = vpop.f32.mrf.mxu0
        %v1087 = vadd.f32 %v955, %v1086
        %v1088 = vpop.f32.mrf.mxu0
        %v1089 = vadd.f32 %v959, %v1088
        %v1090 = vpop.f32.mrf.mxu0
        %v1091 = vadd.f32 %v955, %v1090
        %v1092 = vpop.f32.mrf.mxu0
        %v1093 = vadd.f32 %v959, %v1092
        %1094 = vmatprep.mubr.bf16.mxu0 0
        %1095 = vmatmul.mubr.bf16.gmra.mxu0 %v930
        %v1096 = vpop.f32.mrf.mxu0
        %v1097 = vadd.f32 %v955, %v1096
        %v1098 = vpop.f32.mrf.mxu0
        %v1099 = vadd.f32 %v959, %v1098
        %v1100 = vpop.f32.mrf.mxu0
        %v1101 = vadd.f32 %v955, %v1100
        %v1102 = vpop.f32.mrf.mxu0
        %v1103 = vadd.f32 %v959, %v1102
        %1104 = vmatprep.mubr.bf16.mxu0 0
        %1105 = vmatmul.mubr.bf16.gmra.mxu0 %v931
        %v1106 = vpop.f32.mrf.mxu0
        %v1107 = vadd.f32 %v955, %v1106
        %v1108 = vpop.f32.mrf.mxu0
        %v1109 = vadd.f32 %v959, %v1108
        %v1110 = vpop.f32.mrf.mxu0
        %v1111 = vadd.f32 %v955, %v1110
        %v1112 = vpop.f32.mrf.mxu0
        %v1113 = vadd.f32 %v959, %v1112
        %1114 = vmatprep.mubr.bf16.mxu0 0
        %1115 = vmatmul.mubr.bf16.gmra.mxu0 %v932
        %v1116 = vpop.f32.mrf.mxu0
        %v1117 = vadd.f32 %v955, %v1116
        %v1118 = vpop.f32.mrf.mxu0
        %v1119 = vadd.f32 %v959, %v1118
        %v1120 = vpop.f32.mrf.mxu0
        %v1121 = vadd.f32 %v955, %v1120
        %v1122 = vpop.f32.mrf.mxu0
        %v1123 = vadd.f32 %v959, %v1122
        %1124 = vmatprep.mubr.bf16.mxu0 0
        %1125 = vmatmul.mubr.bf16.gmra.mxu0 %v933
        %v1126 = vpop.f32.mrf.mxu0
        %v1127 = vadd.f32 %v955, %v1126
        %v1128 = vpop.f32.mrf.mxu0
        %v1129 = vadd.f32 %v959, %v1128
        %v1130 = vpop.f32.mrf.mxu0
        %v1131 = vadd.f32 %v955, %v1130
        %v1132 = vpop.f32.mrf.mxu0
        %v1133 = vadd.f32 %v959, %v1132
        %1134 = vdwg.mxu0
        %1135 = vst [vmem:[%s302] sm:$0xff] %v1077
        %1136 = vst [vmem:[%s302 + $0x8] sm:$0xff] %v1079
        %1137 = vst [vmem:[%s302 + $0x10] sm:$0xff] %v1081
        %1138 = vst [vmem:[%s302 + $0x18] sm:$0xff] %v1083
        %1139 = vst [vmem:[%s302 + $0x20] sm:$0xff] %v1087
        %1140 = vst [vmem:[%s302 + $0x28] sm:$0xff] %v1089
        %1141 = vst [vmem:[%s302 + $0x30] sm:$0xff] %v1091
        %1142 = vst [vmem:[%s302 + $0x38] sm:$0xff] %v1093
        %1143 = vst [vmem:[%s302 + $0x40] sm:$0xff] %v1097
        %1144 = vst [vmem:[%s302 + $0x48] sm:$0xff] %v1099
        %1145 = vst [vmem:[%s302 + $0x50] sm:$0xff] %v1101
        %1146 = vst [vmem:[%s302 + $0x58] sm:$0xff] %v1103
        %1147 = vst [vmem:[%s302 + $0x60] sm:$0xff] %v1107
        %1148 = vst [vmem:[%s302 + $0x68] sm:$0xff] %v1109
        %1149 = vst [vmem:[%s302 + $0x70] sm:$0xff] %v1111
        %1150 = vst [vmem:[%s302 + $0x78] sm:$0xff] %v1113
        %1151 = vst [vmem:[%s302 + $0x80] sm:$0xff] %v1117
        %1152 = vst [vmem:[%s302 + $0x88] sm:$0xff] %v1119
        %1153 = vst [vmem:[%s302 + $0x90] sm:$0xff] %v1121
        %1154 = vst [vmem:[%s302 + $0x98] sm:$0xff] %v1123
        %1155 = vst [vmem:[%s302 + $0xa0] sm:$0xff] %v1127
        %1156 = vst [vmem:[%s302 + $0xa8] sm:$0xff] %v1129
        %1157 = vst [vmem:[%s302 + $0xb0] sm:$0xff] %v1131
        %1158 = vst [vmem:[%s302 + $0xb8] sm:$0xff] %v1133
        %s1159 = sand.u32 %s183, 1
        %s1160 = scalar_lea.sflag [#allocation4], %s1159
        %s1161 = sand.u32 %s183, 1
        %s1162 = smul.addr %s1161, 192
        %s1163 = scalar_lea.vmem [#allocation7], %s1162
        // Predicated region
        $region57: #{tpu_custom_call.1} parent=47 // pred_check
          %p1164 = pneg %p193
        $region58: #{tpu_custom_call.1} parent=47 // pred_check_branch
          %1166 = sbr.rel (%p1164) target = $region60
        $region59: #{tpu_custom_call.1} parent=47 // pred_region
          %s1167 = smul.u32 12, %s23
          %s1169 = ssub.s32 3072, 3072
          %1170 = vsyncadd %s1160, %s1169
          %s1171 = smul.addr %s1167, 2
          %s1172 = smul.addr %s1171, 128
          %s1173 = scalar_lea.hbm %s7, %s1172
          %s1174 = sshll.u32 %s1163, 4
          %s1175 = int_to_ptr.vmem [resolvable:$true] %s1174
          %1180 = dma.vmem_to_hbm [thread:$0]  %s1175, 3072, %s1173, %s1160, 256, 256, 16
        $region60: #{tpu_custom_call.1} parent=47 // pred_fallthru
          _
      $region48: #{tpu_custom_call.1} parent=5 // pred_fallthru
        _
      %p1181 = scmp.le.s32.totalorder 2, %s18
      // Predicated region
      $region61: #{tpu_custom_call.1} parent=5 // pred_check
        %p1182 = pneg %p1181
      $region62: #{tpu_custom_call.1} parent=5 // pred_check_branch
        %1184 = sbr.rel (%p1182) target = $region64
      $region63: #{tpu_custom_call.1} parent=5 // pred_region
        %s1185 = ssub.s32 %s18, 2
        // Predicated region
        $region65: #{tpu_custom_call.1} parent=63 // pred_check
          %p1186 = pneg %p199
        $region66: #{tpu_custom_call.1} parent=63 // pred_check_branch
          %1188 = sbr.rel (%p1186) target = $region68
        $region67: #{tpu_custom_call.1} parent=63 // pred_region
          %s1189 = sand.u32 %s184, 1
          %s1190 = scalar_lea.sflag [#allocation4], %s1189
          %s1191 = sand.u32 %s184, 1
          %s1192 = smul.addr %s1191, 192
          %s1193 = scalar_lea.vmem [#allocation7], %s1192
          %1194 = dma.done %s1190, 3072
        $region68: #{tpu_custom_call.1} parent=63 // pred_fallthru
          _
      $region64: #{tpu_custom_call.1} parent=5 // pred_fallthru
        _
    $region6: #{tpu_custom_call.1} parent=1 // loop_footer
      %s22 = sadd.s32 1, %s18
    $region7: #{tpu_custom_call.1} parent=1 // loop_footer_branch
      %17 = sbr.rel target = $region3
    $region8: #{tpu_custom_call.1} parent=1 // loop_exit
      _
    %1195 = vsyncpa [#allocation3], 1
    %s1196 = scalar_lea.sflag [#allocation3], 1
    %1197 = vsyncpa %s1196, 1
    %1198 = vsyncpa [#allocation6], 1
    %1199 = vsyncpa [#allocation4], 1
    %s1200 = scalar_lea.sflag [#allocation4], 1
    %1201 = vsyncpa %s1200, 1

</llo_original>
